<compile_context>
chip_gen: v7x
topology: tpu7x:2x2x1
jax: 0.10.0
libtpu: 0.0.40
codegen_flags: <defaults>
</compile_context>

<pallas_src>
import functools

import jax
import jax.numpy as jnp
from jax.experimental import pallas as pl
from jax.experimental.pallas import tpu as pltpu


def _round_up(x, m):
    return (x + m - 1) // m * m


def _layer_salt(layer_idx):
    # Distinct 32-bit salt per layer so layers get decorrelated masks.
    return jnp.uint32(((layer_idx + 1) * 0xC2B2AE3D) & 0xFFFFFFFF)


def _dropout_half(y, seed_u32, salt_u32, row0_u32):
    """Dropout with p=0.5 and 1/(1-p)=2 scaling.

    Keep decision = top bit of a splitmix32-style hash of
    (seed, salt, global_row, col) -> exact probability 1/2, deterministic,
    independent of how rows are tiled across the grid.
    """
    rows = jax.lax.broadcasted_iota(jnp.int32, y.shape, 0).astype(jnp.uint32) + row0_u32
    cols = jax.lax.broadcasted_iota(jnp.int32, y.shape, 1).astype(jnp.uint32)
    h = rows * jnp.uint32(0x9E3779B1)
    h = h ^ (cols * jnp.uint32(0x85EBCA77))
    h = h + seed_u32
    h = h ^ salt_u32
    # splitmix32 finalizer
    h = h ^ (h >> 16)
    h = h * jnp.uint32(0x7FEB352D)
    h = h ^ (h >> 15)
    h = h * jnp.uint32(0x846CA68B)
    h = h ^ (h >> 16)
    keep = (h >> 31) == jnp.uint32(0)
    return jnp.where(keep, y * 2.0, 0.0)


def _make_fused_prenet_kernel(num_layers, tile_n):
    """Fused kernel: all Prenet layers on one row tile; hidden stays on-chip."""

    def kernel(seed_ref, *refs):
        x_ref = refs[0]
        w_refs = refs[1:1 + num_layers]
        o_ref = refs[1 + num_layers]

        seed = seed_ref[0].astype(jnp.uint32)
        row0 = (pl.program_id(0) * tile_n).astype(jnp.uint32)

        h = x_ref[...]
        for li in range(num_layers):
            # MXU matmul, f32 accumulation (weights already in (in, out) layout).
            y = jnp.dot(h, w_refs[li][...], preferred_element_type=jnp.float32)
            y = jnp.maximum(y, 0.0)                       # ReLU on VPU
            h = _dropout_half(y, seed, _layer_salt(li), row0)
        o_ref[...] = h.astype(o_ref.dtype)

    return kernel


@functools.partial(jax.jit, static_argnames=("out_dim",))
def _prenet_forward(x, seed, w_pads, out_dim):
    orig_shape = x.shape
    in_dim = orig_shape[-1]
    n = 1
    for d in orig_shape[:-1]:
        n *= d
    x2 = x.reshape(n, in_dim).astype(jnp.float32)

    in_p = w_pads[0].shape[0]
    out_p = w_pads[-1].shape[1]
    num_layers = len(w_pads)

    # Row tiling: big enough to pipeline well, small enough for v7x VMEM.
    tile_n = 512 if n > 512 else _round_up(n, 8)
    n_pad = _round_up(n, tile_n)

    # Zero-pad rows to a multiple of the tile and features to 128 lanes.
    x_pad = jnp.zeros((n_pad, in_p), jnp.float32).at[:n, :in_dim].set(x2)

    kernel = _make_fused_prenet_kernel(num_layers, tile_n)

    in_specs = [pl.BlockSpec((tile_n, in_p), lambda i, s: (i, 0))]
    for w in w_pads:  # weights pinned (same block every grid step)
        in_specs.append(pl.BlockSpec(w.shape, lambda i, s: (0, 0)))

    out_pad = pl.pallas_call(
        kernel,
        out_shape=jax.ShapeDtypeStruct((n_pad, out_p), jnp.float32),
        grid_spec=pltpu.PrefetchScalarGridSpec(
            num_scalar_prefetch=1,
            grid=(n_pad // tile_n,),
            in_specs=in_specs,
            out_specs=pl.BlockSpec((tile_n, out_p), lambda i, s: (i, 0)),
        ),
        compiler_params=pltpu.CompilerParams(
            dimension_semantics=("parallel",),
        ),
    )(seed, x_pad, *w_pads)

    return out_pad[:n, :out_dim].reshape(orig_shape[:-1] + (out_dim,))


class PrenetPallas:
    """JAX/Pallas port of the PyTorch Prenet module (forward pass only)."""

    def __init__(self, in_dim, sizes, key):
        self.in_dim = int(in_dim)
        self.sizes = [int(s) for s in sizes]
        dims = [self.in_dim] + self.sizes
        dims_p = [_round_up(d, 128) for d in dims]
        self.w_pads = []
        for li in range(len(self.sizes)):
            fi, fo = dims[li], dims[li + 1]
            key, sub = jax.random.split(key)
            # Xavier-uniform-like init (LinearNorm uses xavier_uniform_), bias=False.
            limit = (6.0 / (fi + fo)) ** 0.5
            w = jax.random.uniform(sub, (fo, fi), jnp.float32, -limit, limit)
            # Pre-transpose to (in, out) and zero-pad feature dims to 128 lanes.
            w_pad = jnp.zeros((dims_p[li], dims_p[li + 1]), jnp.float32)
            w_pad = w_pad.at[:fi, :fo].set(w.T)
            self.w_pads.append(w_pad)

    def __call__(self, x, base_seed=0):
        # TODO(synk): dropout masks are deterministic per base_seed; vary the
        # seed per training step if used for training.
        seed = jnp.asarray([base_seed], dtype=jnp.int32)
        return _prenet_forward(x, seed, tuple(self.w_pads), out_dim=self.sizes[-1])


def _reference_forward(x, prenet, base_seed):
    """Pure-JAX reference using the identical hash-based dropout mask."""
    orig_shape = x.shape
    n = 1
    for d in orig_shape[:-1]:
        n *= d
    h = x.reshape(n, orig_shape[-1]).astype(jnp.float32)
    dims = [prenet.in_dim] + prenet.sizes
    seed_u32 = jnp.uint32(base_seed)
    for li, w_pad in enumerate(prenet.w_pads):
        w = w_pad[:dims[li], :dims[li + 1]]   # unpadded (in, out) weight
        y = jnp.maximum(jnp.dot(h, w), 0.0)
        h = _dropout_half(y, seed_u32, _layer_salt(li), jnp.uint32(0))
    return h.reshape(orig_shape[:-1] + (dims[-1],))


if __name__ == "__main__":
    key = jax.random.PRNGKey(0)
    k_in, k_params = jax.random.split(key)

    # Small shapes consistent with the module: (B, T, in_dim), 2-layer prenet.
    B, T, IN_DIM = 2, 8, 32
    SIZES = [64, 32]

    x = jax.random.normal(k_in, (B, T, IN_DIM), dtype=jnp.float32)

    prenet = PrenetPallas(IN_DIM, SIZES, k_params)
    out = prenet(x, base_seed=1234)
    out = jax.block_until_ready(out)

    assert out.shape == (B, T, SIZES[-1]), out.shape
    assert out.dtype == jnp.float32
    # relu + non-negative dropout scale => non-negative output.
    assert bool(jnp.all(out >= 0.0))

    # Cross-check the fused/padded/tiled kernel against a pure-JAX reference
    # that applies the exact same hash-based dropout mask.
    ref = _reference_forward(x, prenet, base_seed=1234)
    assert bool(jnp.allclose(out, ref, atol=1e-3, rtol=1e-3)), float(
        jnp.max(jnp.abs(out - ref)))

    # Roughly 3/4 of entries should be exact zeros (relu ~1/2, dropout ~1/2).
    zero_frac = float(jnp.mean(out == 0.0))
    assert 0.3 < zero_frac < 0.97, zero_frac

    print("KERNEL_OK")
</pallas_src>

<mosaic_0001>
module attributes {stable_mosaic.version = 11 : i64} {
  func.func @kernel(%arg0: i32, %arg1: memref<1xi32, #tpu.memory_space<smem>>, %arg2: memref<16x128xf32, #tpu.memory_space<vmem>>, %arg3: memref<128x128xf32, #tpu.memory_space<vmem>>, %arg4: memref<128x128xf32, #tpu.memory_space<vmem>>, %arg5: memref<16x128xf32, #tpu.memory_space<vmem>>) attributes {dimension_semantics = [#tpu.dimension_semantics<parallel>], iteration_bounds = array<i64: 1>, scalar_prefetch = 1 : i64, scratch_operands = 0 : i64, tpu.core_type = #tpu.core_type<tc>, window_params = [{transform_indices = @transform_0, window_bounds = array<i64: 16, 128>}, {pipeline_mode = #tpu.pipeline_mode<synchronous>, transform_indices = @transform_1, window_bounds = array<i64: 128, 128>}, {pipeline_mode = #tpu.pipeline_mode<synchronous>, transform_indices = @transform_2, window_bounds = array<i64: 128, 128>}, {transform_indices = @transform_3, window_bounds = array<i64: 16, 128>}]} {
    %c0 = arith.constant 0 : index
    %0 = memref.load %arg1[%c0] : memref<1xi32, #tpu.memory_space<smem>>
    %c16_i32 = arith.constant 16 : i32
    %1 = arith.muli %arg0, %c16_i32 : i32
    %c0_0 = arith.constant 0 : index
    %c0_1 = arith.constant 0 : index
    %2 = vector.load %arg2[%c0_0, %c0_1] : memref<16x128xf32, #tpu.memory_space<vmem>>, vector<16x128xf32>
    %c0_2 = arith.constant 0 : index
    %c0_3 = arith.constant 0 : index
    %3 = vector.load %arg3[%c0_2, %c0_3] : memref<128x128xf32, #tpu.memory_space<vmem>>, vector<128x128xf32>
    %cst = arith.constant dense<0.000000e+00> : vector<16x128xf32>
    %4 = tpu.matmul %2, %3, %cst {dimension_numbers = #tpu.dot_dimension_numbers<[1], [0], [0], [1], [0, 0, 1, 1], [], []>} : vector<16x128xf32>, vector<128x128xf32>, vector<16x128xf32> -> vector<16x128xf32>
    %cst_4 = arith.constant 0.000000e+00 : f32
    %5 = vector.broadcast %cst_4 : f32 to vector<16x128xf32>
    %6 = arith.maximumf %4, %5 : vector<16x128xf32>
    %7 = tpu.iota {dimensions = array<i32: 0>} : vector<16x128xi32>
    %8 = vector.broadcast %1 : i32 to vector<16x128xi32>
    %9 = arith.addi %7, %8 : vector<16x128xi32>
    %10 = tpu.iota {dimensions = array<i32: 1>} : vector<16x128xi32>
    %c-1640531535_i32 = arith.constant -1640531535 : i32
    %11 = vector.broadcast %c-1640531535_i32 : i32 to vector<16x128xi32>
    %12 = arith.muli %9, %11 : vector<16x128xi32>
    %c-2048144777_i32 = arith.constant -2048144777 : i32
    %13 = vector.broadcast %c-2048144777_i32 : i32 to vector<16x128xi32>
    %14 = arith.muli %10, %13 : vector<16x128xi32>
    %15 = arith.xori %12, %14 : vector<16x128xi32>
    %16 = vector.broadcast %0 : i32 to vector<16x128xi32>
    %17 = arith.addi %15, %16 : vector<16x128xi32>
    %c-1028477379_i32 = arith.constant -1028477379 : i32
    %18 = vector.broadcast %c-1028477379_i32 : i32 to vector<16x128xi32>
    %19 = arith.xori %17, %18 : vector<16x128xi32>
    %c16_i32_5 = arith.constant 16 : i32
    %20 = vector.broadcast %c16_i32_5 : i32 to vector<16x128xi32>
    %21 = arith.shrui %19, %20 : vector<16x128xi32>
    %22 = arith.xori %19, %21 : vector<16x128xi32>
    %c2146121005_i32 = arith.constant 2146121005 : i32
    %23 = vector.broadcast %c2146121005_i32 : i32 to vector<16x128xi32>
    %24 = arith.muli %22, %23 : vector<16x128xi32>
    %c15_i32 = arith.constant 15 : i32
    %25 = vector.broadcast %c15_i32 : i32 to vector<16x128xi32>
    %26 = arith.shrui %24, %25 : vector<16x128xi32>
    %27 = arith.xori %24, %26 : vector<16x128xi32>
    %c-2073254261_i32 = arith.constant -2073254261 : i32
    %28 = vector.broadcast %c-2073254261_i32 : i32 to vector<16x128xi32>
    %29 = arith.muli %27, %28 : vector<16x128xi32>
    %c16_i32_6 = arith.constant 16 : i32
    %30 = vector.broadcast %c16_i32_6 : i32 to vector<16x128xi32>
    %31 = arith.shrui %29, %30 : vector<16x128xi32>
    %32 = arith.xori %29, %31 : vector<16x128xi32>
    %c31_i32 = arith.constant 31 : i32
    %33 = vector.broadcast %c31_i32 : i32 to vector<16x128xi32>
    %34 = arith.shrui %32, %33 : vector<16x128xi32>
    %c0_i32 = arith.constant 0 : i32
    %35 = vector.broadcast %c0_i32 : i32 to vector<16x128xi32>
    %36 = arith.cmpi eq, %34, %35 : vector<16x128xi32>
    %cst_7 = arith.constant 2.000000e+00 : f32
    %37 = vector.broadcast %cst_7 : f32 to vector<16x128xf32>
    %38 = arith.mulf %6, %37 : vector<16x128xf32>
    %cst_8 = arith.constant 0.000000e+00 : f32
    %39 = vector.broadcast %cst_8 : f32 to vector<16x128xf32>
    %40 = arith.select %36, %38, %39 : vector<16x128xi1>, vector<16x128xf32>
    %c0_9 = arith.constant 0 : index
    %c0_10 = arith.constant 0 : index
    %41 = vector.load %arg4[%c0_9, %c0_10] : memref<128x128xf32, #tpu.memory_space<vmem>>, vector<128x128xf32>
    %cst_11 = arith.constant dense<0.000000e+00> : vector<16x128xf32>
    %42 = tpu.matmul %40, %41, %cst_11 {dimension_numbers = #tpu.dot_dimension_numbers<[1], [0], [0], [1], [0, 0, 1, 1], [], []>} : vector<16x128xf32>, vector<128x128xf32>, vector<16x128xf32> -> vector<16x128xf32>
    %cst_12 = arith.constant 0.000000e+00 : f32
    %43 = vector.broadcast %cst_12 : f32 to vector<16x128xf32>
    %44 = arith.maximumf %42, %43 : vector<16x128xf32>
    %45 = tpu.iota {dimensions = array<i32: 0>} : vector<16x128xi32>
    %46 = vector.broadcast %1 : i32 to vector<16x128xi32>
    %47 = arith.addi %45, %46 : vector<16x128xi32>
    %48 = tpu.iota {dimensions = array<i32: 1>} : vector<16x128xi32>
    %c-1640531535_i32_13 = arith.constant -1640531535 : i32
    %49 = vector.broadcast %c-1640531535_i32_13 : i32 to vector<16x128xi32>
    %50 = arith.muli %47, %49 : vector<16x128xi32>
    %c-2048144777_i32_14 = arith.constant -2048144777 : i32
    %51 = vector.broadcast %c-2048144777_i32_14 : i32 to vector<16x128xi32>
    %52 = arith.muli %48, %51 : vector<16x128xi32>
    %53 = arith.xori %50, %52 : vector<16x128xi32>
    %54 = vector.broadcast %0 : i32 to vector<16x128xi32>
    %55 = arith.addi %53, %54 : vector<16x128xi32>
    %c-2056954758_i32 = arith.constant -2056954758 : i32
    %56 = vector.broadcast %c-2056954758_i32 : i32 to vector<16x128xi32>
    %57 = arith.xori %55, %56 : vector<16x128xi32>
    %c16_i32_15 = arith.constant 16 : i32
    %58 = vector.broadcast %c16_i32_15 : i32 to vector<16x128xi32>
    %59 = arith.shrui %57, %58 : vector<16x128xi32>
    %60 = arith.xori %57, %59 : vector<16x128xi32>
    %c2146121005_i32_16 = arith.constant 2146121005 : i32
    %61 = vector.broadcast %c2146121005_i32_16 : i32 to vector<16x128xi32>
    %62 = arith.muli %60, %61 : vector<16x128xi32>
    %c15_i32_17 = arith.constant 15 : i32
    %63 = vector.broadcast %c15_i32_17 : i32 to vector<16x128xi32>
    %64 = arith.shrui %62, %63 : vector<16x128xi32>
    %65 = arith.xori %62, %64 : vector<16x128xi32>
    %c-2073254261_i32_18 = arith.constant -2073254261 : i32
    %66 = vector.broadcast %c-2073254261_i32_18 : i32 to vector<16x128xi32>
    %67 = arith.muli %65, %66 : vector<16x128xi32>
    %c16_i32_19 = arith.constant 16 : i32
    %68 = vector.broadcast %c16_i32_19 : i32 to vector<16x128xi32>
    %69 = arith.shrui %67, %68 : vector<16x128xi32>
    %70 = arith.xori %67, %69 : vector<16x128xi32>
    %c31_i32_20 = arith.constant 31 : i32
    %71 = vector.broadcast %c31_i32_20 : i32 to vector<16x128xi32>
    %72 = arith.shrui %70, %71 : vector<16x128xi32>
    %c0_i32_21 = arith.constant 0 : i32
    %73 = vector.broadcast %c0_i32_21 : i32 to vector<16x128xi32>
    %74 = arith.cmpi eq, %72, %73 : vector<16x128xi32>
    %cst_22 = arith.constant 2.000000e+00 : f32
    %75 = vector.broadcast %cst_22 : f32 to vector<16x128xf32>
    %76 = arith.mulf %44, %75 : vector<16x128xf32>
    %cst_23 = arith.constant 0.000000e+00 : f32
    %77 = vector.broadcast %cst_23 : f32 to vector<16x128xf32>
    %78 = arith.select %74, %76, %77 : vector<16x128xi1>, vector<16x128xf32>
    %c0_24 = arith.constant 0 : index
    %c0_25 = arith.constant 0 : index
    %79 = vector.load %arg5[%c0_24, %c0_25] : memref<16x128xf32, #tpu.memory_space<vmem>>, vector<16x128xf32>
    tpu.vector_store %arg5[%c0_24, %c0_25], %78 {strides = array<i32>} : memref<16x128xf32, #tpu.memory_space<vmem>>, vector<16x128xf32>,
    return
  }
  func.func @transform_0(%arg0: i32, %arg1: memref<1xi32, #tpu.memory_space<smem>>) -> (i32, i32) {
    %c0_i32 = arith.constant 0 : i32
    %c0_i32_0 = arith.constant 0 : i32
    return %arg0, %c0_i32 : i32, i32
  }
  func.func @transform_1(%arg0: i32, %arg1: memref<1xi32, #tpu.memory_space<smem>>) -> (i32, i32) {
    %c0_i32 = arith.constant 0 : i32
    %c0_i32_0 = arith.constant 0 : i32
    %c0_i32_1 = arith.constant 0 : i32
    return %c0_i32, %c0_i32_0 : i32, i32
  }
  func.func @transform_2(%arg0: i32, %arg1: memref<1xi32, #tpu.memory_space<smem>>) -> (i32, i32) {
    %c0_i32 = arith.constant 0 : i32
    %c0_i32_0 = arith.constant 0 : i32
    %c0_i32_1 = arith.constant 0 : i32
    return %c0_i32, %c0_i32_0 : i32, i32
  }
  func.func @transform_3(%arg0: i32, %arg1: memref<1xi32, #tpu.memory_space<smem>>) -> (i32, i32) {
    %c0_i32 = arith.constant 0 : i32
    %c0_i32_0 = arith.constant 0 : i32
    return %arg0, %c0_i32 : i32, i32
  }
}

</mosaic_0001>

<llo_original>
// kernel: _prenet_forward.1
$region0: #{_prenet_forward.1}
  #allocation0 [shape = 'u32[]', space=smem, size = 0x4, offset = 0x4, fixed_abs, tag = 'smem constant byte address 0x4 - core index']
  #allocation1 [shape = 'u32[144,128]{1,0:T(1,128)}', space=vmem, size = 0x12000, scoped, tag = 'internal scratch']
  #allocation2 [shape = 's32[1]{0}', space=sflag, size = 0x4, scoped, tag = 'scoped memory for _prenet_forward.1']
  #allocation3 [shape = 's32[1]{0:T(128)S(6)}', space=smem, size = 0x200, scoped, tag = 'prefetched SMEM operand 0']
  %s0 = inlined_call_operand.<no memory space> [shape: s32[1], index: 0, kind: input, shape index: {}]
  %s1 = inlined_call_operand.vmem [shape: f32[16,128], index: 1, kind: input, shape index: {}]
  %s2 = inlined_call_operand.hbm [shape: f32[128,128], index: 2, kind: input, shape index: {}]
  %s3 = inlined_call_operand.hbm [shape: f32[128,128], index: 3, kind: input, shape index: {}]
  %s4 = inlined_call_operand.vmem [shape: f32[16,128], index: 4, kind: output, shape index: {}]
  %s5 = sld [smem:[#allocation0]]
  $region30: #{_prenet_forward.1} parent=0
    _
  %s7 = ssub.s32 1, %s5
  %s8 = scalar_select 0, %s7, %s5
  %9 = sst [smem:[#allocation3]] %s0
  $region1: #{_prenet_forward.1} parent=0
    #allocation4 [shape = 'u8[65536]{0}', space=vmem, size = 0x10000, scoped, tag = 'input window, operand 2, single buffered']
    #allocation5 [shape = 's32[1]{0}', space=sflag, size = 0x4, scoped, tag = 'scoped memory for _prenet_forward.1']
    #allocation6 [shape = 'u8[65536]{0}', space=vmem, size = 0x10000, scoped, tag = 'input window, operand 3, single buffered']
    #allocation7 [shape = 's32[1]{0}', space=sflag, size = 0x4, scoped, tag = 'scoped memory for _prenet_forward.1']
    %10 = vsyncpa [#allocation5], 0
    %11 = vsyncpa [#allocation7], 0
    // Predicated region
    $region2: #{_prenet_forward.1} parent=1 // pred_check
      _
    $region3: #{_prenet_forward.1} parent=1 // pred_check_branch
      %13 = sbr.rel (0) target = $region5
    $region4: #{_prenet_forward.1} parent=1 // pred_region
      _
    $region5: #{_prenet_forward.1} parent=1 // pred_fallthru
      _
    // Predicated region
    $region6: #{_prenet_forward.1} parent=1 // pred_check
      _
    $region7: #{_prenet_forward.1} parent=1 // pred_check_branch
      %15 = sbr.rel (0) target = $region9
    $region8: #{_prenet_forward.1} parent=1 // pred_region
      %s17 = ssub.s32 2048, 2048
      %18 = vsyncadd [#allocation5], %s17
      %s19 = sshll.u32 [#allocation4], 4
      %s20 = int_to_ptr.vmem [resolvable:$true] %s19
      %25 = dma.hbm_to_vmem [thread:$0]  %s2, 2048, %s20, [#allocation5], 128, 128, 8
    $region9: #{_prenet_forward.1} parent=1 // pred_fallthru
      _
    // Predicated region
    $region10: #{_prenet_forward.1} parent=1 // pred_check
      _
    $region11: #{_prenet_forward.1} parent=1 // pred_check_branch
      %27 = sbr.rel (0) target = $region13
    $region12: #{_prenet_forward.1} parent=1 // pred_region
      %s29 = ssub.s32 2048, 2048
      %30 = vsyncadd [#allocation7], %s29
      %s31 = sshll.u32 [#allocation6], 4
      %s32 = int_to_ptr.vmem [resolvable:$true] %s31
      %37 = dma.hbm_to_vmem [thread:$0]  %s3, 2048, %s32, [#allocation7], 128, 128, 8
    $region13: #{_prenet_forward.1} parent=1 // pred_fallthru
      _
    // Predicated region
    $region14: #{_prenet_forward.1} parent=1 // pred_check
      _
    $region15: #{_prenet_forward.1} parent=1 // pred_check_branch
      %39 = sbr.rel (0) target = $region17
    $region16: #{_prenet_forward.1} parent=1 // pred_region
      %40 = dma.done [#allocation5], 2048
    $region17: #{_prenet_forward.1} parent=1 // pred_fallthru
      _
    // Predicated region
    $region18: #{_prenet_forward.1} parent=1 // pred_check
      _
    $region19: #{_prenet_forward.1} parent=1 // pred_check_branch
      %42 = sbr.rel (0) target = $region21
    $region20: #{_prenet_forward.1} parent=1 // pred_region
      %43 = dma.done [#allocation7], 2048
    $region21: #{_prenet_forward.1} parent=1 // pred_fallthru
      _
    %s44 = sld [smem:[#allocation3]]
    %s45 = smul.u32 0, 16
    %v46 = vld [vmem:[%s1] sm:$0xff]
    %v47 = vld [vmem:[%s1 + $0x8] sm:$0xff]
    %v48 = vld [vmem:[#allocation4] sm:$0xff]
    %v49 = vld [vmem:[#allocation4 + $0x8] sm:$0xff]
    %v50 = vld [vmem:[#allocation4 + $0x10] sm:$0xff]
    %v51 = vld [vmem:[#allocation4 + $0x18] sm:$0xff]
    %v52 = vld [vmem:[#allocation4 + $0x20] sm:$0xff]
    %v53 = vld [vmem:[#allocation4 + $0x28] sm:$0xff]
    %v54 = vld [vmem:[#allocation4 + $0x30] sm:$0xff]
    %v55 = vld [vmem:[#allocation4 + $0x38] sm:$0xff]
    %v56 = vld [vmem:[#allocation4 + $0x40] sm:$0xff]
    %v57 = vld [vmem:[#allocation4 + $0x48] sm:$0xff]
    %v58 = vld [vmem:[#allocation4 + $0x50] sm:$0xff]
    %v59 = vld [vmem:[#allocation4 + $0x58] sm:$0xff]
    %v60 = vld [vmem:[#allocation4 + $0x60] sm:$0xff]
    %v61 = vld [vmem:[#allocation4 + $0x68] sm:$0xff]
    %v62 = vld [vmem:[#allocation4 + $0x70] sm:$0xff]
    %v63 = vld [vmem:[#allocation4 + $0x78] sm:$0xff]
    %64 = vmatprep.subr.mxu0 0.0
    %65 = vmatpush1.msra.mxu0 %v48
    %66 = vmatprep.subr.mxu0 0.0
    %67 = vmatpush1.msra.mxu0 %v49
    %68 = vmatprep.subr.mxu0 0.0
    %69 = vmatpush1.msra.mxu0 %v50
    %70 = vmatprep.subr.mxu0 0.0
    %71 = vmatpush1.msra.mxu0 %v51
    %72 = vmatprep.subr.mxu0 0.0
    %73 = vmatpush1.msra.mxu0 %v52
    %74 = vmatprep.subr.mxu0 0.0
    %75 = vmatpush1.msra.mxu0 %v53
    %76 = vmatprep.subr.mxu0 0.0
    %77 = vmatpush1.msra.mxu0 %v54
    %78 = vmatprep.subr.mxu0 0.0
    %79 = vmatpush1.msra.mxu0 %v55
    %80 = vmatprep.subr.mxu0 0.0
    %81 = vmatpush1.msra.mxu0 %v56
    %82 = vmatprep.subr.mxu0 0.0
    %83 = vmatpush1.msra.mxu0 %v57
    %84 = vmatprep.subr.mxu0 0.0
    %85 = vmatpush1.msra.mxu0 %v58
    %86 = vmatprep.subr.mxu0 0.0
    %87 = vmatpush1.msra.mxu0 %v59
    %88 = vmatprep.subr.mxu0 0.0
    %89 = vmatpush1.msra.mxu0 %v60
    %90 = vmatprep.subr.mxu0 0.0
    %91 = vmatpush1.msra.mxu0 %v61
    %92 = vmatprep.subr.mxu0 0.0
    %93 = vmatpush1.msra.mxu0 %v62
    %94 = vmatprep.subr.mxu0 0.0
    %95 = vmatpush1.msra.mxu0 %v63
    %96 = vmatprep.subr.mxu0 0.0
    %97 = vmatpush1.msra.mxu0 0.0
    %98 = vmatprep.subr.mxu0 0.0
    %99 = vmatpush1.msra.mxu0 0.0
    %100 = vmatprep.subr.mxu0 0.0
    %101 = vmatpush1.msra.mxu0 0.0
    %102 = vmatprep.subr.mxu0 0.0
    %103 = vmatpush1.msra.mxu0 0.0
    %104 = vmatprep.subr.mxu0 0.0
    %105 = vmatpush1.msra.mxu0 0.0
    %106 = vmatprep.subr.mxu0 0.0
    %107 = vmatpush1.msra.mxu0 0.0
    %108 = vmatprep.subr.mxu0 0.0
    %109 = vmatpush1.msra.mxu0 0.0
    %110 = vmatprep.subr.mxu0 0.0
    %111 = vmatpush1.msra.mxu0 0.0
    %112 = vmatprep.subr.mxu0 0.0
    %113 = vmatpush1.msra.mxu0 0.0
    %114 = vmatprep.subr.mxu0 0.0
    %115 = vmatpush1.msra.mxu0 0.0
    %116 = vmatprep.subr.mxu0 0.0
    %117 = vmatpush1.msra.mxu0 0.0
    %118 = vmatprep.subr.mxu0 0.0
    %119 = vmatpush1.msra.mxu0 0.0
    %120 = vmatprep.subr.mxu0 0.0
    %121 = vmatpush1.msra.mxu0 0.0
    %122 = vmatprep.subr.mxu0 0.0
    %123 = vmatpush1.msra.mxu0 0.0
    %124 = vmatprep.subr.mxu0 0.0
    %125 = vmatpush1.msra.mxu0 0.0
    %126 = vmatprep.subr.mxu0 0.0
    %127 = vmatpush1.msra.mxu0 0.0
    %128 = vmatprep.mubr.f32.mxu0 0.0
    %129 = vmatmul.mubr.f32.gmra.mrb[0].mxu0 %v46
    %v130 = vpop.f32.mrb[0].mxu0
    %v131 = vadd.f32 0.0, %v130
    %v132 = vpop.f32.mrb[0].mxu0
    %133 = vmatprep.mubr.f32.mxu0 0.0
    %134 = vmatmul.mubr.f32.gmra.mrb[0].mxu0 %v47
    %v135 = vpop.f32.mrb[0].mxu0
    %v136 = vadd.f32 0.0, %v135
    %v137 = vpop.f32.mrb[0].mxu0
    %138 = vdwg.mxu0
    %v139 = vmax.f32 %v131, 0.0
    %v140 = vmax.f32 %v136, 0.0
    %v141 = vlaneseq
    %v142 = vshrl.u32 %v141, 7
    %v143 = vadd.s32 %v142, 8
    %v144 = vstv %s45
    %v145 = vadd.s32 %v142, %v144
    %v146 = vadd.s32 %v143, %v144
    %v147 = vlaneseq
    %v148 = vand.u32 %v147, 127
    %v149 = vmul.u32 %v145, 2654435761
    %v150 = vmul.u32 %v146, 2654435761
    %v151 = vmul.u32 %v148, 2246822519
    %v152 = vxor.u32 %v149, %v151
    %v153 = vxor.u32 %v150, %v151
    %v154 = vstv %s44
    %v155 = vadd.s32 %v152, %v154
    %v156 = vadd.s32 %v153, %v154
    %v157 = vxor.u32 %v155, 3266489917
    %v158 = vxor.u32 %v156, 3266489917
    %v159 = vshrl.u32 %v157, 16
    %v160 = vshrl.u32 %v158, 16
    %v161 = vxor.u32 %v157, %v159
    %v162 = vxor.u32 %v158, %v160
    %v163 = vmul.u32 %v161, 2146121005
    %v164 = vmul.u32 %v162, 2146121005
    %v165 = vshrl.u32 %v163, 15
    %v166 = vshrl.u32 %v164, 15
    %v167 = vxor.u32 %v163, %v165
    %v168 = vxor.u32 %v164, %v166
    %v169 = vmul.u32 %v167, 2221713035
    %v170 = vmul.u32 %v168, 2221713035
    %v171 = vshrl.u32 %v169, 16
    %v172 = vshrl.u32 %v170, 16
    %v173 = vxor.u32 %v169, %v171
    %v174 = vxor.u32 %v170, %v172
    %v175 = vshrl.u32 %v173, 31
    %v176 = vshrl.u32 %v174, 31
    %vm177 = vcmp.eq.s32.totalorder %v175, 0
    %vm178 = vcmp.eq.s32.totalorder %v176, 0
    %v179 = vmul.f32 %v139, 2.0
    %v180 = vmul.f32 %v140, 2.0
    %v181 = vsel %vm177, %v179, 0.0
    %v182 = vsel %vm178, %v180, 0.0
    %v183 = vld [vmem:[#allocation6] sm:$0xff]
    %v184 = vld [vmem:[#allocation6 + $0x8] sm:$0xff]
    %v185 = vld [vmem:[#allocation6 + $0x10] sm:$0xff]
    %v186 = vld [vmem:[#allocation6 + $0x18] sm:$0xff]
    %v187 = vld [vmem:[#allocation6 + $0x20] sm:$0xff]
    %v188 = vld [vmem:[#allocation6 + $0x28] sm:$0xff]
    %v189 = vld [vmem:[#allocation6 + $0x30] sm:$0xff]
    %v190 = vld [vmem:[#allocation6 + $0x38] sm:$0xff]
    %v191 = vld [vmem:[#allocation6 + $0x40] sm:$0xff]
    %v192 = vld [vmem:[#allocation6 + $0x48] sm:$0xff]
    %v193 = vld [vmem:[#allocation6 + $0x50] sm:$0xff]
    %v194 = vld [vmem:[#allocation6 + $0x58] sm:$0xff]
    %v195 = vld [vmem:[#allocation6 + $0x60] sm:$0xff]
    %v196 = vld [vmem:[#allocation6 + $0x68] sm:$0xff]
    %v197 = vld [vmem:[#allocation6 + $0x70] sm:$0xff]
    %v198 = vld [vmem:[#allocation6 + $0x78] sm:$0xff]
    %199 = vmatprep.subr.mxu0 0.0
    %200 = vmatpush1.msra.mxu0 %v183
    %201 = vmatprep.subr.mxu0 0.0
    %202 = vmatpush1.msra.mxu0 %v184
    %203 = vmatprep.subr.mxu0 0.0
    %204 = vmatpush1.msra.mxu0 %v185
    %205 = vmatprep.subr.mxu0 0.0
    %206 = vmatpush1.msra.mxu0 %v186
    %207 = vmatprep.subr.mxu0 0.0
    %208 = vmatpush1.msra.mxu0 %v187
    %209 = vmatprep.subr.mxu0 0.0
    %210 = vmatpush1.msra.mxu0 %v188
    %211 = vmatprep.subr.mxu0 0.0
    %212 = vmatpush1.msra.mxu0 %v189
    %213 = vmatprep.subr.mxu0 0.0
    %214 = vmatpush1.msra.mxu0 %v190
    %215 = vmatprep.subr.mxu0 0.0
    %216 = vmatpush1.msra.mxu0 %v191
    %217 = vmatprep.subr.mxu0 0.0
    %218 = vmatpush1.msra.mxu0 %v192
    %219 = vmatprep.subr.mxu0 0.0
    %220 = vmatpush1.msra.mxu0 %v193
    %221 = vmatprep.subr.mxu0 0.0
    %222 = vmatpush1.msra.mxu0 %v194
    %223 = vmatprep.subr.mxu0 0.0
    %224 = vmatpush1.msra.mxu0 %v195
    %225 = vmatprep.subr.mxu0 0.0
    %226 = vmatpush1.msra.mxu0 %v196
    %227 = vmatprep.subr.mxu0 0.0
    %228 = vmatpush1.msra.mxu0 %v197
    %229 = vmatprep.subr.mxu0 0.0
    %230 = vmatpush1.msra.mxu0 %v198
    %231 = vmatprep.subr.mxu0 0.0
    %232 = vmatpush1.msra.mxu0 0.0
    %233 = vmatprep.subr.mxu0 0.0
    %234 = vmatpush1.msra.mxu0 0.0
    %235 = vmatprep.subr.mxu0 0.0
    %236 = vmatpush1.msra.mxu0 0.0
    %237 = vmatprep.subr.mxu0 0.0
    %238 = vmatpush1.msra.mxu0 0.0
    %239 = vmatprep.subr.mxu0 0.0
    %240 = vmatpush1.msra.mxu0 0.0
    %241 = vmatprep.subr.mxu0 0.0
    %242 = vmatpush1.msra.mxu0 0.0
    %243 = vmatprep.subr.mxu0 0.0
    %244 = vmatpush1.msra.mxu0 0.0
    %245 = vmatprep.subr.mxu0 0.0
    %246 = vmatpush1.msra.mxu0 0.0
    %247 = vmatprep.subr.mxu0 0.0
    %248 = vmatpush1.msra.mxu0 0.0
    %249 = vmatprep.subr.mxu0 0.0
    %250 = vmatpush1.msra.mxu0 0.0
    %251 = vmatprep.subr.mxu0 0.0
    %252 = vmatpush1.msra.mxu0 0.0
    %253 = vmatprep.subr.mxu0 0.0
    %254 = vmatpush1.msra.mxu0 0.0
    %255 = vmatprep.subr.mxu0 0.0
    %256 = vmatpush1.msra.mxu0 0.0
    %257 = vmatprep.subr.mxu0 0.0
    %258 = vmatpush1.msra.mxu0 0.0
    %259 = vmatprep.subr.mxu0 0.0
    %260 = vmatpush1.msra.mxu0 0.0
    %261 = vmatprep.subr.mxu0 0.0
    %262 = vmatpush1.msra.mxu0 0.0
    %263 = vmatprep.mubr.f32.mxu0 0.0
    %264 = vmatmul.mubr.f32.gmra.mrb[0].mxu0 %v181
    %v265 = vpop.f32.mrb[0].mxu0
    %v266 = vadd.f32 0.0, %v265
    %v267 = vpop.f32.mrb[0].mxu0
    %268 = vmatprep.mubr.f32.mxu0 0.0
    %269 = vmatmul.mubr.f32.gmra.mrb[0].mxu0 %v182
    %v270 = vpop.f32.mrb[0].mxu0
    %v271 = vadd.f32 0.0, %v270
    %v272 = vpop.f32.mrb[0].mxu0
    %273 = vdwg.mxu0
    %v274 = vmax.f32 %v266, 0.0
    %v275 = vmax.f32 %v271, 0.0
    %v276 = vxor.u32 %v155, 2238012538
    %v277 = vxor.u32 %v156, 2238012538
    %v278 = vshrl.u32 %v276, 16
    %v279 = vshrl.u32 %v277, 16
    %v280 = vxor.u32 %v276, %v278
    %v281 = vxor.u32 %v277, %v279
    %v282 = vmul.u32 %v280, 2146121005
    %v283 = vmul.u32 %v281, 2146121005
    %v284 = vshrl.u32 %v282, 15
    %v285 = vshrl.u32 %v283, 15
    %v286 = vxor.u32 %v282, %v284
    %v287 = vxor.u32 %v283, %v285
    %v288 = vmul.u32 %v286, 2221713035
    %v289 = vmul.u32 %v287, 2221713035
    %v290 = vshrl.u32 %v288, 16
    %v291 = vshrl.u32 %v289, 16
    %v292 = vxor.u32 %v288, %v290
    %v293 = vxor.u32 %v289, %v291
    %v294 = vshrl.u32 %v292, 31
    %v295 = vshrl.u32 %v293, 31
    %vm296 = vcmp.eq.s32.totalorder %v294, 0
    %vm297 = vcmp.eq.s32.totalorder %v295, 0
    %v298 = vmul.f32 %v274, 2.0
    %v299 = vmul.f32 %v275, 2.0
    %v300 = vsel %vm296, %v298, 0.0
    %v301 = vsel %vm297, %v299, 0.0
    %302 = vst [vmem:[%s4] sm:$0xff] %v300
    %303 = vst [vmem:[%s4 + $0x8] sm:$0xff] %v301
    // Predicated region
    $region22: #{_prenet_forward.1} parent=1 // pred_check
      _
    $region23: #{_prenet_forward.1} parent=1 // pred_check_branch
      %305 = sbr.rel (0) target = $region25
    $region24: #{_prenet_forward.1} parent=1 // pred_region
      _
    $region25: #{_prenet_forward.1} parent=1 // pred_fallthru
      _
    // Predicated region
    $region26: #{_prenet_forward.1} parent=1 // pred_check
      _
    $region27: #{_prenet_forward.1} parent=1 // pred_check_branch
      %307 = sbr.rel (0) target = $region29
    $region28: #{_prenet_forward.1} parent=1 // pred_region
      _
    $region29: #{_prenet_forward.1} parent=1 // pred_fallthru
      _
    %308 = vsyncpa [#allocation5], 1
    %309 = vsyncpa [#allocation7], 1

</llo_original>
